<compile_context>
chip_gen: v6e
topology: v6e:2x2x1
jax: 0.10.0
libtpu: 0.0.40
codegen_flags: <defaults>
</compile_context>

<pallas_src>
import jax
import jax.numpy as jnp
from jax import lax
from jax.experimental import pallas as pl
from jax.experimental.pallas import tpu as pltpu


_VMEM_SPEC = pl.BlockSpec(memory_space=pltpu.MemorySpace.VMEM)

# Above this batch size the batch axis is gridded (double-buffered x DMA,
# weight resident in VMEM); at or below it a single grid-less matmul is used.
_GRID_N_THRESHOLD = 1024
_GRID_TM = 1024


def _mxu_kernel(x_ref, w_ref, b_ref, o_ref):
    # x_ref: (N, C_in) bf16, w_ref: (C_out, C_in) bf16 (natural PyTorch layout,
    # contracted on its last dim -> transpose-free), b_ref: (1, C_out) f32.
    acc = lax.dot_general(
        x_ref[...], w_ref[...],
        dimension_numbers=(((1,), (1,)), ((), ())),
        preferred_element_type=jnp.float32,
    )
    o_ref[...] = (acc + b_ref[...]).astype(o_ref.dtype)


def _mxu_grid_kernel(x_ref, wt_ref, b_ref, o_ref):
    # Gridded large-N path. wt_ref is pre-transposed to (C_in, C_out) in the
    # wrapper (one-time, outside the grid loop) so no per-step XLU transpose.
    acc = jnp.dot(x_ref[...], wt_ref[...], preferred_element_type=jnp.float32)
    o_ref[...] = (acc + b_ref[...]).astype(o_ref.dtype)


def _cost(n, c_in, c_out, out_dtype):
    out_bytes = jnp.dtype(out_dtype).itemsize
    return pl.CostEstimate(
        flops=2 * n * c_in * c_out,
        transcendentals=0,
        bytes_accessed=(n * c_in * 2          # bf16 activations
                        + c_out * c_in * 2    # bf16 weight (dominant)
                        + n * c_out * out_bytes
                        + c_out * 4),         # f32 bias
    )


def _conv1x1_small_n(x2d, w2d, b2d, out_dtype):
    n, c_in = x2d.shape
    c_out = w2d.shape[0]
    return pl.pallas_call(
        _mxu_kernel,
        out_shape=jax.ShapeDtypeStruct((n, c_out), out_dtype),
        in_specs=[_VMEM_SPEC, _VMEM_SPEC, _VMEM_SPEC],
        out_specs=_VMEM_SPEC,
        cost_estimate=_cost(n, c_in, c_out, out_dtype),
    )(x2d, w2d, b2d)


def _conv1x1_large_n(x2d, wt2d, b2d, out_dtype, tm):
    n, c_in = x2d.shape
    c_out = wt2d.shape[1]
    return pl.pallas_call(
        _mxu_grid_kernel,
        out_shape=jax.ShapeDtypeStruct((n, c_out), out_dtype),
        grid_spec=pltpu.PrefetchScalarGridSpec(
            num_scalar_prefetch=0,
            grid=(pl.cdiv(n, tm),),
            in_specs=[
                pl.BlockSpec((tm, c_in), lambda i: (i, 0)),     # x tiles, pipelined
                pl.BlockSpec((c_in, c_out), lambda i: (0, 0)),  # weight resident
                pl.BlockSpec((1, c_out), lambda i: (0, 0)),     # bias resident
            ],
            out_specs=pl.BlockSpec((tm, c_out), lambda i: (i, 0)),
        ),
        compiler_params=pltpu.CompilerParams(
            dimension_semantics=("parallel",),  # v7x: shard batch across 2 TCs
        ),
        cost_estimate=_cost(n, c_in, c_out, out_dtype),
    )(x2d, wt2d, b2d)


@jax.jit
def conv2d_1x1(x_nchw, weight, bias):
    """1x1 conv, stride 1, no padding; this synthetic module only sees 1x1 spatial.

    x_nchw: (N, C_in, 1, 1), weight: (C_out, C_in, 1, 1), bias: (C_out,)
    returns: (N, C_out, 1, 1)
    """
    n, c_in, h, w = x_nchw.shape
    assert h == 1 and w == 1, "this synthetic module only sees 1x1 spatial"
    c_out = weight.shape[0]
    out_dtype = x_nchw.dtype

    # Free reshapes (H == W == 1); bf16 at the kernel boundary, f32 accumulate.
    x2d = x_nchw.reshape(n, c_in).astype(jnp.bfloat16)
    w2d = weight.reshape(c_out, c_in).astype(jnp.bfloat16)   # natural layout
    b2d = bias.reshape(1, c_out).astype(jnp.float32)

    if n <= _GRID_N_THRESHOLD:
        out = _conv1x1_small_n(x2d, w2d, b2d, out_dtype)
    else:
        wt2d = w2d.T   # one-time wrapper transpose (XLA, outside the grid loop)
        out = _conv1x1_large_n(x2d, wt2d, b2d, out_dtype, _GRID_TM)
    return out.reshape(n, c_out, 1, 1)


if __name__ == "__main__":
    key = jax.random.PRNGKey(0)
    kx, kw, kb = jax.random.split(key, 3)

    N, C_IN, C_OUT = 1, 640, 40

    # Deterministic synthetic parameters (Conv2d(640, 40, kernel_size=1) shapes).
    x = jax.random.normal(kx, (N, C_IN, 1, 1), dtype=jnp.float32)
    weight = jax.random.normal(kw, (C_OUT, C_IN, 1, 1), dtype=jnp.float32) * 0.02
    bias = jax.random.normal(kb, (C_OUT,), dtype=jnp.float32) * 0.02

    out = conv2d_1x1(x, weight, bias)
    jax.block_until_ready(out)

    # Reference check in plain JAX (bf16 inputs -> relaxed tolerance vs f32 ref).
    ref = (x.reshape(N, C_IN) @ weight.reshape(C_OUT, C_IN).T + bias).reshape(
        N, C_OUT, 1, 1
    )
    assert out.shape == (N, C_OUT, 1, 1)
    assert jnp.allclose(out, ref, atol=3e-2, rtol=3e-2)

    # Secondary check: exercise the gridded large-N path at a small, fast shape
    # (tiny tile so the grid has several steps).
    n2 = 32
    x2 = jax.random.normal(jax.random.PRNGKey(1), (n2, C_IN), dtype=jnp.float32)
    out2 = _conv1x1_large_n(
        x2.astype(jnp.bfloat16),
        weight.reshape(C_OUT, C_IN).astype(jnp.bfloat16).T,
        bias.reshape(1, C_OUT).astype(jnp.float32),
        jnp.float32,
        8,
    )
    jax.block_until_ready(out2)
    ref2 = x2 @ weight.reshape(C_OUT, C_IN).T + bias
    assert jnp.allclose(out2, ref2, atol=3e-2, rtol=3e-2)

    print("KERNEL_OK")
</pallas_src>

<mosaic_0001>
module attributes {stable_mosaic.version = 11 : i64} {
  func.func @_mxu_kernel(%arg0: memref<1x640xbf16, #tpu.memory_space<vmem>>, %arg1: memref<40x640xbf16, #tpu.memory_space<vmem>>, %arg2: memref<1x40xf32, #tpu.memory_space<vmem>>, %arg3: memref<1x40xf32, #tpu.memory_space<vmem>>) attributes {dimension_semantics = [], scalar_prefetch = 0 : i64, scratch_operands = 0 : i64, tpu.core_type = #tpu.core_type<tc>} {
    %c0 = arith.constant 0 : index
    %c0_0 = arith.constant 0 : index
    %0 = vector.load %arg0[%c0, %c0_0] : memref<1x640xbf16, #tpu.memory_space<vmem>>, vector<1x640xbf16>
    %c0_1 = arith.constant 0 : index
    %c0_2 = arith.constant 0 : index
    %1 = vector.load %arg1[%c0_1, %c0_2] : memref<40x640xbf16, #tpu.memory_space<vmem>>, vector<40x640xbf16>
    %cst = arith.constant dense<0.000000e+00> : vector<1x40xf32>
    %2 = tpu.matmul %0, %1, %cst {dimension_numbers = #tpu.dot_dimension_numbers<[1], [1], [0], [0], [0, 0, 1, 0], [], []>} : vector<1x640xbf16>, vector<40x640xbf16>, vector<1x40xf32> -> vector<1x40xf32>
    %c0_3 = arith.constant 0 : index
    %c0_4 = arith.constant 0 : index
    %3 = vector.load %arg2[%c0_3, %c0_4] : memref<1x40xf32, #tpu.memory_space<vmem>>, vector<1x40xf32>
    %4 = arith.addf %2, %3 : vector<1x40xf32>
    %c0_5 = arith.constant 0 : index
    %c0_6 = arith.constant 0 : index
    %5 = vector.load %arg3[%c0_5, %c0_6] : memref<1x40xf32, #tpu.memory_space<vmem>>, vector<1x40xf32>
    tpu.vector_store %arg3[%c0_5, %c0_6], %4 {strides = array<i32>} : memref<1x40xf32, #tpu.memory_space<vmem>>, vector<1x40xf32>,
    return
  }
}

</mosaic_0001>

<llo_original>
// kernel: conv2d_1x1.1
$region0: #{conv2d_1x1.1}
  #allocation0 [shape = 'u32[]', space=smem, size = 0x4, offset = 0x4, fixed_abs, tag = 'smem constant byte address 0x4 - core index']
  #allocation1 [shape = 'u32[144,128]{1,0:T(1,128)}', space=vmem, size = 0x12000, scoped, tag = 'internal scratch']
  %s0 = inlined_call_operand.vmem [shape: bf16[1,640], index: 0, kind: input, shape index: {}]
  %s1 = inlined_call_operand.vmem [shape: bf16[40,640], index: 1, kind: input, shape index: {}]
  %s2 = inlined_call_operand.vmem [shape: f32[1,40], index: 2, kind: input, shape index: {}]
  %s3 = inlined_call_operand.hbm [shape: f32[1,40], index: 3, kind: output, shape index: {}]
  %s4 = sld [smem:[#allocation0]]
  $region22: #{conv2d_1x1.1} parent=0
    _
  %s6 = ssub.s32 1, %s4
  %s7 = scalar_select 0, %s6, %s4
  $region1: #{conv2d_1x1.1} parent=0
    #allocation2 [shape = 'u8[512]{0}', space=vmem, size = 0x400, scoped, tag = 'output window, operand 0, single buffered']
    #allocation3 [shape = 's32[1]{0}', space=sflag, size = 0x4, scoped, tag = 'scoped memory for conv2d_1x1.1']
    %8 = vsyncpa [#allocation3], 0
    // Predicated region
    $region2: #{conv2d_1x1.1} parent=1 // pred_check
      _
    $region3: #{conv2d_1x1.1} parent=1 // pred_check_branch
      %10 = sbr.rel (0) target = $region5
    $region4: #{conv2d_1x1.1} parent=1 // pred_region
      _
    $region5: #{conv2d_1x1.1} parent=1 // pred_fallthru
      _
    // Predicated region
    $region6: #{conv2d_1x1.1} parent=1 // pred_check
      _
    $region7: #{conv2d_1x1.1} parent=1 // pred_check_branch
      %12 = sbr.rel (0) target = $region9
    $region8: #{conv2d_1x1.1} parent=1 // pred_region
      _
    $region9: #{conv2d_1x1.1} parent=1 // pred_fallthru
      _
    // Predicated region
    $region10: #{conv2d_1x1.1} parent=1 // pred_check
      _
    $region11: #{conv2d_1x1.1} parent=1 // pred_check_branch
      %14 = sbr.rel (0) target = $region13
    $region12: #{conv2d_1x1.1} parent=1 // pred_region
      _
    $region13: #{conv2d_1x1.1} parent=1 // pred_fallthru
      _
    %v16 = vld [vmem:[%s0] sm:$0x1f]
    %v17 = vld [vmem:[%s1] sm:$0xff]
    %v18 = vld [vmem:[%s1 + $0x8] sm:$0xff]
    %v19 = vld [vmem:[%s1 + $0x10] sm:$0xf]
    %v20 = vld [vmem:[%s1 + $0x14] sm:$0xff]
    %v21 = vld [vmem:[%s1 + $0x1c] sm:$0xff]
    %v22 = vld [vmem:[%s1 + $0x24] sm:$0xf]
    %v23 = vld [vmem:[%s1 + $0x28] sm:$0xff]
    %v24 = vld [vmem:[%s1 + $0x30] sm:$0xff]
    %v25 = vld [vmem:[%s1 + $0x38] sm:$0xf]
    %v26 = vld [vmem:[%s1 + $0x3c] sm:$0xff]
    %v27 = vld [vmem:[%s1 + $0x44] sm:$0xff]
    %v28 = vld [vmem:[%s1 + $0x4c] sm:$0xf]
    %v29 = vld [vmem:[%s1 + $0x50] sm:$0xff]
    %v30 = vld [vmem:[%s1 + $0x58] sm:$0xff]
    %v31 = vld [vmem:[%s1 + $0x60] sm:$0xf]
    %v32 = vld [vmem:[%s2] sm:$0x1]
    %v34 = vcombine.high %v16, %v16
    %v36 = vunpack.c.l.s4 1966171168
    %v37 = vunpack.c.0.s8 %v36
    %v38 = vlaneseq
    %v39 = vshrl.u32 %v38, 7
    %v40 = vsub.s32 %v37, %v39
    %v41 = vrot.slane %v16, %v40
    %v43 = vunpack.c.l.s4 1966171168
    %v44 = vunpack.c.0.s8 %v43
    %v45 = vlaneseq
    %v46 = vshrl.u32 %v45, 7
    %v47 = vsub.s32 %v44, %v46
    %v48 = vrot.slane %v34, %v47
    %v49 = vcombine.high %v41, %v41
    %v51 = vunpack.c.l.s4 1966171168
    %v52 = vunpack.c.0.s8 %v51
    %v53 = vlaneseq
    %v54 = vshrl.u32 %v53, 7
    %v55 = vsub.s32 %v52, %v54
    %v56 = vrot.slane %v41, %v55
    %v58 = vunpack.c.l.s4 1966171168
    %v59 = vunpack.c.0.s8 %v58
    %v60 = vlaneseq
    %v61 = vshrl.u32 %v60, 7
    %v62 = vsub.s32 %v59, %v61
    %v63 = vrot.slane %v48, %v62
    %v65 = vunpack.c.l.s4 1966171168
    %v66 = vunpack.c.0.s8 %v65
    %v67 = vlaneseq
    %v68 = vshrl.u32 %v67, 7
    %v69 = vsub.s32 %v66, %v68
    %v70 = vrot.slane %v49, %v69
    %v71 = vcombine.high %v56, %v56
    %v72 = vcombine.high %v70, %v70
    %v93 = vunpack.c.l.b16 %v17
    %v94 = vunpack.c.h.b16 %v17
    %v95 = vunpack.c.l.b16 %v18
    %v96 = vunpack.c.h.b16 %v18
    %v97 = vunpack.c.l.b16 %v19
    %v98 = vunpack.c.l.b16 %v20
    %v99 = vunpack.c.h.b16 %v20
    %v100 = vunpack.c.l.b16 %v21
    %v101 = vunpack.c.h.b16 %v21
    %v102 = vunpack.c.l.b16 %v22
    %v103 = vunpack.c.l.b16 %v23
    %v104 = vunpack.c.h.b16 %v23
    %v105 = vunpack.c.l.b16 %v24
    %v106 = vunpack.c.h.b16 %v24
    %v107 = vunpack.c.l.b16 %v25
    %v108 = vunpack.c.l.b16 %v26
    %v109 = vunpack.c.h.b16 %v26
    %v110 = vunpack.c.l.b16 %v27
    %v111 = vunpack.c.h.b16 %v27
    %v112 = vunpack.c.l.b16 %v28
    %v113 = vunpack.c.l.b16 %v29
    %v114 = vunpack.c.h.b16 %v29
    %v115 = vunpack.c.l.b16 %v30
    %v116 = vunpack.c.h.b16 %v30
    %v117 = vunpack.c.l.b16 %v31
    %v118 = vpack.c.b16 %v98, %v93
    %v119 = vpack.c.b16 %v99, %v94
    %v120 = vpack.c.b16 %v100, %v95
    %v121 = vpack.c.b16 %v101, %v96
    %v122 = vpack.c.b16 %v102, %v97
    %v123 = vpack.c.b16 %v108, %v103
    %v124 = vpack.c.b16 %v109, %v104
    %v125 = vpack.c.b16 %v110, %v105
    %v126 = vpack.c.b16 %v111, %v106
    %v127 = vpack.c.b16 %v112, %v107
    %v128 = vpack.c.b16 %v113, %v113
    %v129 = vpack.c.b16 %v114, %v114
    %v130 = vpack.c.b16 %v115, %v115
    %v131 = vpack.c.b16 %v116, %v116
    %v132 = vpack.c.b16 %v117, %v117
    %148 = vmatprep.subr.bf16.mxu0 0
    %149 = vmatpush1.bf16.xpose.msra.mxu0 0
    %150 = vmatprep.subr.bf16.mxu0 0
    %151 = vmatpush1.bf16.xpose.msra.mxu0 0
    %152 = vmatprep.subr.bf16.mxu0 0
    %153 = vmatpush1.bf16.xpose.msra.mxu0 0
    %154 = vmatprep.subr.bf16.mxu0 0
    %155 = vmatpush1.bf16.xpose.msra.mxu0 0
    %156 = vmatprep.subr.bf16.mxu0 0
    %157 = vmatpush1.bf16.xpose.msra.mxu0 0
    %158 = vmatprep.subr.bf16.mxu0 %v129
    %159 = vmatpush1.bf16.xpose.msra.mxu0 %v128
    %160 = vmatprep.subr.bf16.mxu0 %v124
    %161 = vmatpush1.bf16.xpose.msra.mxu0 %v123
    %162 = vmatprep.subr.bf16.mxu0 %v119
    %163 = vmatpush1.bf16.xpose.msra.mxu0 %v118
    %164 = vmatprep.subr.bf16.mxu0 0
    %165 = vmatpush2.bf16.xpose.msra.mxu0 0
    %166 = vmatprep.subr.bf16.mxu0 0
    %167 = vmatpush2.bf16.xpose.msra.mxu0 0
    %168 = vmatprep.subr.bf16.mxu0 0
    %169 = vmatpush2.bf16.xpose.msra.mxu0 0
    %170 = vmatprep.subr.bf16.mxu0 0
    %171 = vmatpush2.bf16.xpose.msra.mxu0 0
    %172 = vmatprep.subr.bf16.mxu0 0
    %173 = vmatpush2.bf16.xpose.msra.mxu0 0
    %174 = vmatprep.subr.bf16.mxu0 0
    %175 = vmatpush2.bf16.xpose.msra.mxu0 0
    %176 = vmatprep.subr.bf16.mxu0 0
    %177 = vmatpush2.bf16.xpose.msra.mxu0 0
    %178 = vmatprep.subr.bf16.mxu0 0
    %179 = vmatpush2.bf16.xpose.msra.mxu0 0
    %180 = vmatprep.mubr.bf16.mxu0 %v70
    %181 = vmatmul.mubr.bf16.gmra.mxu0 %v56
    %v182 = vpop.f32.mrf.mxu0
    %v183 = vadd.f32 %v32, %v182
    %v184 = vpop.f32.mrf.mxu0
    %v185 = vpop.f32.mrf.mxu0
    %v186 = vpop.f32.mrf.mxu0
    %187 = vdwg.mxu0
    %188 = vmatprep.subr.bf16.mxu0 0
    %189 = vmatpush1.bf16.xpose.msra.mxu0 0
    %190 = vmatprep.subr.bf16.mxu0 0
    %191 = vmatpush1.bf16.xpose.msra.mxu0 0
    %192 = vmatprep.subr.bf16.mxu0 0
    %193 = vmatpush1.bf16.xpose.msra.mxu0 0
    %194 = vmatprep.subr.bf16.mxu0 0
    %195 = vmatpush1.bf16.xpose.msra.mxu0 0
    %196 = vmatprep.subr.bf16.mxu0 0
    %197 = vmatpush1.bf16.xpose.msra.mxu0 0
    %198 = vmatprep.subr.bf16.mxu0 %v131
    %199 = vmatpush1.bf16.xpose.msra.mxu0 %v130
    %200 = vmatprep.subr.bf16.mxu0 %v126
    %201 = vmatpush1.bf16.xpose.msra.mxu0 %v125
    %202 = vmatprep.subr.bf16.mxu0 %v121
    %203 = vmatpush1.bf16.xpose.msra.mxu0 %v120
    %204 = vmatprep.subr.bf16.mxu0 0
    %205 = vmatpush2.bf16.xpose.msra.mxu0 0
    %206 = vmatprep.subr.bf16.mxu0 0
    %207 = vmatpush2.bf16.xpose.msra.mxu0 0
    %208 = vmatprep.subr.bf16.mxu0 0
    %209 = vmatpush2.bf16.xpose.msra.mxu0 0
    %210 = vmatprep.subr.bf16.mxu0 0
    %211 = vmatpush2.bf16.xpose.msra.mxu0 0
    %212 = vmatprep.subr.bf16.mxu0 0
    %213 = vmatpush2.bf16.xpose.msra.mxu0 0
    %214 = vmatprep.subr.bf16.mxu0 0
    %215 = vmatpush2.bf16.xpose.msra.mxu0 0
    %216 = vmatprep.subr.bf16.mxu0 0
    %217 = vmatpush2.bf16.xpose.msra.mxu0 0
    %218 = vmatprep.subr.bf16.mxu0 0
    %219 = vmatpush2.bf16.xpose.msra.mxu0 0
    %220 = vmatprep.mubr.bf16.mxu0 %v72
    %221 = vmatmul.mubr.bf16.gmra.mxu0 %v71
    %v222 = vpop.f32.mrf.mxu0
    %v223 = vadd.f32 %v183, %v222
    %v224 = vpop.f32.mrf.mxu0
    %v225 = vpop.f32.mrf.mxu0
    %v226 = vpop.f32.mrf.mxu0
    %227 = vdwg.mxu0
    %228 = vmatprep.subr.bf16.mxu0 0
    %229 = vmatpush1.bf16.xpose.msra.mxu0 0
    %230 = vmatprep.subr.bf16.mxu0 0
    %231 = vmatpush1.bf16.xpose.msra.mxu0 0
    %232 = vmatprep.subr.bf16.mxu0 0
    %233 = vmatpush1.bf16.xpose.msra.mxu0 0
    %234 = vmatprep.subr.bf16.mxu0 0
    %235 = vmatpush1.bf16.xpose.msra.mxu0 0
    %236 = vmatprep.subr.bf16.mxu0 0
    %237 = vmatpush1.bf16.xpose.msra.mxu0 0
    %238 = vmatprep.subr.bf16.mxu0 0
    %239 = vmatpush1.bf16.xpose.msra.mxu0 %v132
    %240 = vmatprep.subr.bf16.mxu0 0
    %241 = vmatpush1.bf16.xpose.msra.mxu0 %v127
    %242 = vmatprep.subr.bf16.mxu0 0
    %243 = vmatpush1.bf16.xpose.msra.mxu0 %v122
    %244 = vmatprep.subr.bf16.mxu0 0
    %245 = vmatpush2.bf16.xpose.msra.mxu0 0
    %246 = vmatprep.subr.bf16.mxu0 0
    %247 = vmatpush2.bf16.xpose.msra.mxu0 0
    %248 = vmatprep.subr.bf16.mxu0 0
    %249 = vmatpush2.bf16.xpose.msra.mxu0 0
    %250 = vmatprep.subr.bf16.mxu0 0
    %251 = vmatpush2.bf16.xpose.msra.mxu0 0
    %252 = vmatprep.subr.bf16.mxu0 0
    %253 = vmatpush2.bf16.xpose.msra.mxu0 0
    %254 = vmatprep.subr.bf16.mxu0 0
    %255 = vmatpush2.bf16.xpose.msra.mxu0 0
    %256 = vmatprep.subr.bf16.mxu0 0
    %257 = vmatpush2.bf16.xpose.msra.mxu0 0
    %258 = vmatprep.subr.bf16.mxu0 0
    %259 = vmatpush2.bf16.xpose.msra.mxu0 0
    %260 = vmatprep.mubr.bf16.mxu0 0
    %261 = vmatmul.mubr.bf16.gmra.mxu0 %v63
    %v262 = vpop.f32.mrf.mxu0
    %v263 = vadd.f32 %v223, %v262
    %v264 = vpop.f32.mrf.mxu0
    %v265 = vpop.f32.mrf.mxu0
    %v266 = vpop.f32.mrf.mxu0
    %267 = vdwg.mxu0
    %vm268 = vcmask 319488
    %269 = vst.msk [vmem:[#allocation2] sm:$0x1] %vm268, %v263
    // Predicated region
    $region14: #{conv2d_1x1.1} parent=1 // pred_check
      _
    $region15: #{conv2d_1x1.1} parent=1 // pred_check_branch
      %271 = sbr.rel (0) target = $region17
    $region16: #{conv2d_1x1.1} parent=1 // pred_region
      %s273 = ssub.s32 16, 16
      %274 = vsyncadd [#allocation3], %s273
      %s276 = sshll.u32 [#allocation2], 4
      %s277 = int_to_ptr.vmem [resolvable:$true] %s276
      %279 = dma.vmem_to_hbm [thread:$0]  %s277, 16, %s3, [#allocation3]
    $region17: #{conv2d_1x1.1} parent=1 // pred_fallthru
      _
    // Predicated region
    $region18: #{conv2d_1x1.1} parent=1 // pred_check
      _
    $region19: #{conv2d_1x1.1} parent=1 // pred_check_branch
      %281 = sbr.rel (0) target = $region21
    $region20: #{conv2d_1x1.1} parent=1 // pred_region
      %282 = dma.done [#allocation3], 16
    $region21: #{conv2d_1x1.1} parent=1 // pred_fallthru
      _
    %283 = vsyncpa [#allocation3], 1

</llo_original>
